<compile_context>
chip_gen: v6e
topology: v6e:2x2x1
jax: 0.10.0
libtpu: 0.0.40
codegen_flags: <defaults>
</compile_context>

<pallas_src>
import functools

import jax
import jax.numpy as jnp
from jax.experimental import pallas as pl
from jax.experimental.pallas import tpu as pltpu


def _ce_kernel(pred_ref, true_ref, out_ref, m_ref, l_ref, p_ref, *,
               ignore_index, n_total, c_total, block_n, block_c, mask_cols):
    # pred_ref: (block_n, block_c) in the INPUT dtype (bf16/f32), VMEM
    # true_ref: (block_n, 1) int32, VMEM
    # out_ref : (1, 8, 128) f32 partial block  [0,0,:]=loss sum  [0,1,:]=valid count
    # m_ref/l_ref/p_ref: (block_n, 1) f32 scratch — running max / running exp-sum /
    #                    target-class logit, carried across the class-chunk axis.
    i = pl.program_id(0)          # row-tile index   ("parallel")
    j = pl.program_id(1)          # class-chunk index ("arbitrary", innermost)
    nj = pl.num_programs(1)

    @pl.when(j == 0)
    def _init():
        m_ref[...] = jnp.full_like(m_ref, -jnp.inf)
        l_ref[...] = jnp.zeros_like(l_ref)
        p_ref[...] = jnp.zeros_like(p_ref)

    raw = pred_ref[...]                                      # (bn, bc) input dtype
    targets = true_ref[...]                                  # (bn, 1) int32

    # Global class ids of this chunk's columns.
    col_ids = j * block_c + jax.lax.broadcasted_iota(jnp.int32, raw.shape, 1)

    logits = raw.astype(jnp.float32)                         # upcast on the VPU, in VMEM
    if mask_cols:
        # Ragged last class chunk: out-of-bounds columns hold garbage — select them
        # to -inf so they contribute exp(-inf)=0 (select, never multiply).
        logits = jnp.where(col_ids < c_total, logits, -jnp.inf)

    # ---- online logsumexp over class chunks ------------------------------------
    blk_max = jnp.max(logits, axis=-1, keepdims=True)        # (bn, 1)
    m_prev = m_ref[...]
    m_new = jnp.maximum(m_prev, blk_max)
    alpha = jnp.exp(m_prev - m_new)
    l_ref[...] = alpha * l_ref[...] + jnp.sum(jnp.exp(logits - m_new),
                                              axis=-1, keepdims=True)
    m_ref[...] = m_new

    # ---- gather the target-class logit (one-hot compare/select in input dtype) --
    hit = col_ids == targets                                  # (bn, bc) bool
    p_ref[...] += jnp.sum(jnp.where(hit, raw, jnp.zeros_like(raw)),
                          axis=-1, keepdims=True).astype(jnp.float32)

    @pl.when(j == nj - 1)
    def _finalize():
        # Validity from the GLOBAL row index (pred is NOT padded in the wrapper, so
        # trailing rows of the last tile contain garbage), plus PyTorch's
        # ignore_index and an out-of-range-target guard.
        row_ids = i * block_n + jax.lax.broadcasted_iota(jnp.int32, (block_n, 1), 0)
        tgt = true_ref[...]
        valid = jnp.logical_and(
            row_ids < n_total,
            jnp.logical_and(jnp.logical_and(tgt >= 0, tgt < c_total),
                            tgt != ignore_index))

        # per-row loss = logsumexp(logits) - logits[target]  (select masks NaN/inf
        # coming from garbage rows; it is never a multiply).
        per_example = jnp.where(valid,
                                m_ref[...] + jnp.log(l_ref[...]) - p_ref[...],
                                0.0)
        loss_sum = jnp.sum(per_example)
        cnt = jnp.sum(valid.astype(jnp.float32))

        # Lane-dense (8,128) partial block: row 0 = loss sum, row 1 = valid count.
        row_idx = jax.lax.broadcasted_iota(jnp.int32, (8, 128), 0)
        out_ref[0] = jnp.where(row_idx == 0, loss_sum,
                               jnp.where(row_idx == 1, cnt, 0.0))


def _sublane_pack(itemsize):
    # Sublane packing multiple: 8 for f32, 16 for bf16, 32 for int8/fp8.
    return max(8, 32 // int(itemsize))


def _vmem_limit_bytes():
    # Per-chip scoped-VMEM limit: <= ~48 MiB on v7x (64 MiB physical),
    # ~64 MiB on v5e/v6e (128 MiB physical). Falls back conservatively.
    try:
        cap = int(getattr(pltpu.get_tpu_info(), "vmem_capacity_bytes", 0))
    except Exception:
        cap = 0
    if cap <= 0:
        cap = 64 * 1024 * 1024
    return int(min((cap * 3) // 4, 64 * 1024 * 1024))


def _choose_blocks(n, c, itemsize, vmem_limit):
    """Pick (block_n, block_c) so the LIVE bytes per tile (double-buffered input
    + ~2 f32 intermediates) fit in about half the scoped VMEM limit."""
    pack = _sublane_pack(itemsize)
    per_elem = 2 * itemsize + 8              # 2x input buffers + f32 logits + exp tile
    budget = vmem_limit // 2
    n_ceil = -(-n // pack) * pack

    # Preferred: keep the whole class dim in one chunk.
    bn_full = (budget // max(c * per_elem, 1)) // pack * pack
    if bn_full >= pack:
        bn = int(max(pack, min(bn_full, 1024, n_ceil)))
        return bn, int(c)

    # Large-C (vocab-scale): modest row tile, split classes in 128-multiples
    # and use the online-logsumexp path across chunks.
    bn = int(max(pack, (min(n_ceil, 256) // pack) * pack))
    bc = (budget // max(bn * per_elem, 1)) // 128 * 128
    bc = int(max(128, bc))
    if bc >= c:
        return bn, int(c)
    return bn, bc


def cross_entropy_loss(pred, true, ignore_index=-100, block_n=None, block_c=None):
    """Equivalent of nn.CrossEntropyLoss()(pred, true) for pred (N, C), true (N,)."""
    n, c = pred.shape
    itemsize = jnp.dtype(pred.dtype).itemsize
    pack = _sublane_pack(itemsize)
    vmem_limit = _vmem_limit_bytes()

    auto_bn, auto_bc = _choose_blocks(n, c, itemsize, vmem_limit)
    bn = auto_bn if block_n is None else max(pack, (int(block_n) // pack) * pack)
    bc = auto_bc if block_c is None else int(block_c)
    if bc >= c:
        bc = int(c)
    else:
        bc = max(128, (bc // 128) * 128)     # partial class chunks must be lane-aligned

    num_n = -(-n // bn)
    num_c = -(-c // bc)
    mask_cols = (c % bc) != 0

    # Only the tiny targets get a dtype/shape fixup; pred goes to the kernel as-is
    # (original dtype, unpadded) and is upcast to f32 on-chip.
    true2d = true.astype(jnp.int32).reshape(n, 1)

    kernel = functools.partial(
        _ce_kernel, ignore_index=int(ignore_index), n_total=int(n), c_total=int(c),
        block_n=int(bn), block_c=int(bc), mask_cols=bool(mask_cols))

    partials = pl.pallas_call(
        kernel,
        out_shape=jax.ShapeDtypeStruct((num_n, 8, 128), jnp.float32),
        grid=(num_n, num_c),
        in_specs=[
            pl.BlockSpec((bn, bc), lambda i, j: (i, j)),
            pl.BlockSpec((bn, 1), lambda i, j: (i, 0)),
        ],
        out_specs=pl.BlockSpec((1, 8, 128), lambda i, j: (i, 0, 0)),
        scratch_shapes=[
            pltpu.VMEM((bn, 1), jnp.float32),   # running max
            pltpu.VMEM((bn, 1), jnp.float32),   # running sum of exp
            pltpu.VMEM((bn, 1), jnp.float32),   # target-class logit
        ],
        compiler_params=pltpu.CompilerParams(
            dimension_semantics=("parallel", "arbitrary"),
            vmem_limit_bytes=int(vmem_limit)),
        cost_estimate=pl.CostEstimate(
            flops=int(5 * n * c),
            transcendentals=int(n * c + n),
            bytes_accessed=int(n * c * itemsize + n * 4 * num_c
                               + num_n * 8 * 128 * 4)),
    )(pred, true2d)

    loss_sum = jnp.sum(partials[:, 0, 0])
    cnt = jnp.sum(partials[:, 1, 0])
    # If every target is ignored, return 0.0 instead of PyTorch's NaN.
    return loss_sum / jnp.maximum(cnt, 1.0)


if __name__ == "__main__":
    key = jax.random.PRNGKey(0)
    k1p, k1t, k2p, k2t, k3p, k3t = jax.random.split(key, 6)

    # --- Test 1: small f32 case, all-valid targets (matches the module's usage) ---
    batch, num_classes = 8, 32
    pred = jax.random.normal(k1p, (batch, num_classes), dtype=jnp.float32)
    true = jax.random.randint(k1t, (batch,), 0, num_classes, dtype=jnp.int32)

    loss = cross_entropy_loss(pred, true)
    jax.block_until_ready(loss)

    logp = jax.nn.log_softmax(pred, axis=-1)
    ref = -jnp.mean(logp[jnp.arange(batch), true])
    assert jnp.allclose(loss, ref, atol=1e-5, rtol=1e-5), (loss, ref)

    # --- Test 2: bf16 logits, N not a multiple of the row tile (unpadded pred ->
    #             garbage rows masked by global row index), plus ignore_index=-100 ---
    n2, c2 = 37, 128
    pred2 = jax.random.normal(k2p, (n2, c2), dtype=jnp.bfloat16)
    true2 = jax.random.randint(k2t, (n2,), 0, c2, dtype=jnp.int32)
    true2 = true2.at[3].set(-100).at[20].set(-100)

    loss2 = cross_entropy_loss(pred2, true2, block_n=16)   # 3 row tiles, rows 37..47 OOB
    jax.block_until_ready(loss2)

    logp2 = jax.nn.log_softmax(pred2.astype(jnp.float32), axis=-1)
    valid2 = true2 != -100
    nll2 = -logp2[jnp.arange(n2), jnp.clip(true2, 0, c2 - 1)]
    ref2 = jnp.sum(jnp.where(valid2, nll2, 0.0)) / jnp.sum(valid2)
    assert jnp.allclose(loss2, ref2, atol=1e-4, rtol=1e-4), (loss2, ref2)

    # --- Test 3: exercises the large-C online-logsumexp path: 2 class chunks with a
    #             ragged last chunk (column masking) + ragged row tile + ignore_index ---
    n3, c3 = 24, 384
    pred3 = jax.random.normal(k3p, (n3, c3), dtype=jnp.float32)
    true3 = jax.random.randint(k3t, (n3,), 0, c3, dtype=jnp.int32)
    true3 = true3.at[5].set(-100)

    loss3 = cross_entropy_loss(pred3, true3, block_n=16, block_c=256)  # grid (2, 2)
    jax.block_until_ready(loss3)

    logp3 = jax.nn.log_softmax(pred3, axis=-1)
    valid3 = true3 != -100
    nll3 = -logp3[jnp.arange(n3), jnp.clip(true3, 0, c3 - 1)]
    ref3 = jnp.sum(jnp.where(valid3, nll3, 0.0)) / jnp.sum(valid3)
    assert jnp.allclose(loss3, ref3, atol=1e-5, rtol=1e-5), (loss3, ref3)

    print("KERNEL_OK")
</pallas_src>

<mosaic_0001>
module attributes {stable_mosaic.version = 11 : i64} {
  func.func @_ce_kernel(%arg0: i32, %arg1: i32, %arg2: memref<8x32xf32, #tpu.memory_space<vmem>>, %arg3: memref<8x1xi32, #tpu.memory_space<vmem>>, %arg4: memref<1x8x128xf32, #tpu.memory_space<vmem>>, %arg5: memref<8x1xf32, #tpu.memory_space<vmem>>, %arg6: memref<8x1xf32, #tpu.memory_space<vmem>>, %arg7: memref<8x1xf32, #tpu.memory_space<vmem>>) attributes {dimension_semantics = [#tpu.dimension_semantics<parallel>, #tpu.dimension_semantics<arbitrary>], iteration_bounds = array<i64: 1, 1>, scalar_prefetch = 0 : i64, scratch_operands = 3 : i64, tpu.core_type = #tpu.core_type<tc>, window_params = [{transform_indices = @transform_0, window_bounds = array<i64: 8, 32>}, {transform_indices = @transform_1, window_bounds = array<i64: 8, 1>}, {transform_indices = @transform_2, window_bounds = array<i64: 1, 8, 128>}]} {
    %c0_i32 = arith.constant 0 : i32
    %0 = arith.cmpi eq, %arg1, %c0_i32 : i32
    %1 = arith.extui %0 : i1 to i32
    %c0_i32_0 = arith.constant 0 : i32
    %2 = arith.cmpi ne, %1, %c0_i32_0 : i32
    scf.if %2 {
      %cst_21 = arith.constant 0xFF800000 : f32
      %37 = vector.broadcast %cst_21 : f32 to vector<8x1xf32>
      %c0_22 = arith.constant 0 : index
      %c0_23 = arith.constant 0 : index
      %38 = vector.load %arg5[%c0_22, %c0_23] : memref<8x1xf32, #tpu.memory_space<vmem>>, vector<8x1xf32>
      tpu.vector_store %arg5[%c0_22, %c0_23], %37 {strides = array<i32>} : memref<8x1xf32, #tpu.memory_space<vmem>>, vector<8x1xf32>,
      %cst_24 = arith.constant 0.000000e+00 : f32
      %39 = vector.broadcast %cst_24 : f32 to vector<8x1xf32>
      %c0_25 = arith.constant 0 : index
      %c0_26 = arith.constant 0 : index
      %40 = vector.load %arg6[%c0_25, %c0_26] : memref<8x1xf32, #tpu.memory_space<vmem>>, vector<8x1xf32>
      tpu.vector_store %arg6[%c0_25, %c0_26], %39 {strides = array<i32>} : memref<8x1xf32, #tpu.memory_space<vmem>>, vector<8x1xf32>,
      %cst_27 = arith.constant 0.000000e+00 : f32
      %41 = vector.broadcast %cst_27 : f32 to vector<8x1xf32>
      %c0_28 = arith.constant 0 : index
      %c0_29 = arith.constant 0 : index
      %42 = vector.load %arg7[%c0_28, %c0_29] : memref<8x1xf32, #tpu.memory_space<vmem>>, vector<8x1xf32>
      tpu.vector_store %arg7[%c0_28, %c0_29], %41 {strides = array<i32>} : memref<8x1xf32, #tpu.memory_space<vmem>>, vector<8x1xf32>,
    } else {
    }
    %c0 = arith.constant 0 : index
    %c0_1 = arith.constant 0 : index
    %3 = vector.load %arg2[%c0, %c0_1] : memref<8x32xf32, #tpu.memory_space<vmem>>, vector<8x32xf32>
    %c0_2 = arith.constant 0 : index
    %c0_3 = arith.constant 0 : index
    %4 = vector.load %arg3[%c0_2, %c0_3] : memref<8x1xi32, #tpu.memory_space<vmem>>, vector<8x1xi32>
    %c32_i32 = arith.constant 32 : i32
    %5 = arith.muli %arg1, %c32_i32 : i32
    %6 = tpu.iota {dimensions = array<i32: 1>} : vector<8x32xi32>
    %7 = vector.broadcast %5 : i32 to vector<8x32xi32>
    %8 = arith.addi %7, %6 : vector<8x32xi32>
    %cst = arith.constant dense<0xFF800000> : vector<8xf32>
    %9 = vector.multi_reduction <maximumf>, %3, %cst [1] : vector<8x32xf32> to vector<8xf32>
    %10 = vector.shape_cast %9 : vector<8xf32> to vector<8x1xf32>
    %c0_4 = arith.constant 0 : index
    %c0_5 = arith.constant 0 : index
    %11 = vector.load %arg5[%c0_4, %c0_5] : memref<8x1xf32, #tpu.memory_space<vmem>>, vector<8x1xf32>
    %12 = arith.maximumf %11, %10 : vector<8x1xf32>
    %13 = arith.subf %11, %12 : vector<8x1xf32>
    %14 = math.exp %13 : vector<8x1xf32>
    %c0_6 = arith.constant 0 : index
    %c0_7 = arith.constant 0 : index
    %15 = vector.load %arg6[%c0_6, %c0_7] : memref<8x1xf32, #tpu.memory_space<vmem>>, vector<8x1xf32>
    %16 = arith.mulf %14, %15 : vector<8x1xf32>
    %17 = vector.broadcast %12 : vector<8x1xf32> to vector<8x32xf32>
    %18 = arith.subf %3, %17 : vector<8x32xf32>
    %19 = math.exp %18 : vector<8x32xf32>
    %cst_8 = arith.constant dense<0.000000e+00> : vector<8xf32>
    %20 = vector.multi_reduction <add>, %19, %cst_8 [1] : vector<8x32xf32> to vector<8xf32>
    %21 = vector.shape_cast %20 : vector<8xf32> to vector<8x1xf32>
    %22 = arith.addf %16, %21 : vector<8x1xf32>
    %c0_9 = arith.constant 0 : index
    %c0_10 = arith.constant 0 : index
    %23 = vector.load %arg6[%c0_9, %c0_10] : memref<8x1xf32, #tpu.memory_space<vmem>>, vector<8x1xf32>
    tpu.vector_store %arg6[%c0_9, %c0_10], %22 {strides = array<i32>} : memref<8x1xf32, #tpu.memory_space<vmem>>, vector<8x1xf32>,
    %c0_11 = arith.constant 0 : index
    %c0_12 = arith.constant 0 : index
    %24 = vector.load %arg5[%c0_11, %c0_12] : memref<8x1xf32, #tpu.memory_space<vmem>>, vector<8x1xf32>
    tpu.vector_store %arg5[%c0_11, %c0_12], %12 {strides = array<i32>} : memref<8x1xf32, #tpu.memory_space<vmem>>, vector<8x1xf32>,
    %25 = vector.broadcast %4 : vector<8x1xi32> to vector<8x32xi32>
    %26 = arith.cmpi eq, %8, %25 : vector<8x32xi32>
    %c0_13 = arith.constant 0 : index
    %c0_14 = arith.constant 0 : index
    %27 = vector.load %arg7[%c0_13, %c0_14] : memref<8x1xf32, #tpu.memory_space<vmem>>, vector<8x1xf32>
    %cst_15 = arith.constant 0.000000e+00 : f32
    %28 = vector.broadcast %cst_15 : f32 to vector<8x32xf32>
    %29 = arith.select %26, %3, %28 : vector<8x32xi1>, vector<8x32xf32>
    %cst_16 = arith.constant dense<0.000000e+00> : vector<8xf32>
    %30 = vector.multi_reduction <add>, %29, %cst_16 [1] : vector<8x32xf32> to vector<8xf32>
    %31 = vector.shape_cast %30 : vector<8xf32> to vector<8x1xf32>
    %32 = arith.addf %27, %31 : vector<8x1xf32>
    %c0_17 = arith.constant 0 : index
    %c0_18 = arith.constant 0 : index
    %33 = vector.load %arg7[%c0_17, %c0_18] : memref<8x1xf32, #tpu.memory_space<vmem>>, vector<8x1xf32>
    tpu.vector_store %arg7[%c0_17, %c0_18], %32 {strides = array<i32>} : memref<8x1xf32, #tpu.memory_space<vmem>>, vector<8x1xf32>,
    %c0_i32_19 = arith.constant 0 : i32
    %34 = arith.cmpi eq, %arg1, %c0_i32_19 : i32
    %35 = arith.extui %34 : i1 to i32
    %c0_i32_20 = arith.constant 0 : i32
    %36 = arith.cmpi ne, %35, %c0_i32_20 : i32
    scf.if %36 {
      %c8_i32 = arith.constant 8 : i32
      %37 = arith.muli %arg0, %c8_i32 : i32
      %38 = tpu.iota {dimensions = array<i32: 0>} : vector<8x1xi32>
      %39 = vector.broadcast %37 : i32 to vector<8x1xi32>
      %40 = arith.addi %39, %38 : vector<8x1xi32>
      %c0_21 = arith.constant 0 : index
      %c0_22 = arith.constant 0 : index
      %41 = vector.load %arg3[%c0_21, %c0_22] : memref<8x1xi32, #tpu.memory_space<vmem>>, vector<8x1xi32>
      %c8_i32_23 = arith.constant 8 : i32
      %42 = vector.broadcast %c8_i32_23 : i32 to vector<8x1xi32>
      %43 = arith.cmpi slt, %40, %42 : vector<8x1xi32>
      %c0_i32_24 = arith.constant 0 : i32
      %44 = vector.broadcast %c0_i32_24 : i32 to vector<8x1xi32>
      %45 = arith.cmpi sge, %41, %44 : vector<8x1xi32>
      %c32_i32_25 = arith.constant 32 : i32
      %46 = vector.broadcast %c32_i32_25 : i32 to vector<8x1xi32>
      %47 = arith.cmpi slt, %41, %46 : vector<8x1xi32>
      %48 = arith.andi %45, %47 : vector<8x1xi1>
      %c-100_i32 = arith.constant -100 : i32
      %49 = vector.broadcast %c-100_i32 : i32 to vector<8x1xi32>
      %50 = arith.cmpi ne, %41, %49 : vector<8x1xi32>
      %51 = arith.andi %48, %50 : vector<8x1xi1>
      %52 = arith.andi %43, %51 : vector<8x1xi1>
      %c0_26 = arith.constant 0 : index
      %c0_27 = arith.constant 0 : index
      %53 = vector.load %arg5[%c0_26, %c0_27] : memref<8x1xf32, #tpu.memory_space<vmem>>, vector<8x1xf32>
      %c0_28 = arith.constant 0 : index
      %c0_29 = arith.constant 0 : index
      %54 = vector.load %arg6[%c0_28, %c0_29] : memref<8x1xf32, #tpu.memory_space<vmem>>, vector<8x1xf32>
      %55 = math.log %54 : vector<8x1xf32>
      %56 = arith.addf %53, %55 : vector<8x1xf32>
      %c0_30 = arith.constant 0 : index
      %c0_31 = arith.constant 0 : index
      %57 = vector.load %arg7[%c0_30, %c0_31] : memref<8x1xf32, #tpu.memory_space<vmem>>, vector<8x1xf32>
      %58 = arith.subf %56, %57 : vector<8x1xf32>
      %cst_32 = arith.constant 0.000000e+00 : f32
      %59 = vector.broadcast %cst_32 : f32 to vector<8x1xf32>
      %60 = arith.select %52, %58, %59 : vector<8x1xi1>, vector<8x1xf32>
      %61 = vector.shape_cast %60 : vector<8x1xf32> to vector<1x8x1xf32>
      %cst_33 = arith.constant dense<0.000000e+00> : vector<1xf32>
      %62 = vector.multi_reduction <add>, %61, %cst_33 [1, 2] : vector<1x8x1xf32> to vector<1xf32>
      %63 = vector.shape_cast %62 : vector<1xf32> to vector<1x1x1xf32>
      %64 = vector.extract %63[0, 0, 0] : f32 from vector<1x1x1xf32>
      %65 = arith.extui %52 : vector<8x1xi1> to vector<8x1xi32>
      %66 = arith.sitofp %65 : vector<8x1xi32> to vector<8x1xf32>
      %67 = vector.shape_cast %66 : vector<8x1xf32> to vector<1x8x1xf32>
      %cst_34 = arith.constant dense<0.000000e+00> : vector<1xf32>
      %68 = vector.multi_reduction <add>, %67, %cst_34 [1, 2] : vector<1x8x1xf32> to vector<1xf32>
      %69 = vector.shape_cast %68 : vector<1xf32> to vector<1x1x1xf32>
      %70 = vector.extract %69[0, 0, 0] : f32 from vector<1x1x1xf32>
      %71 = tpu.iota {dimensions = array<i32: 0>} : vector<8x128xi32>
      %c0_i32_35 = arith.constant 0 : i32
      %72 = vector.broadcast %c0_i32_35 : i32 to vector<8x128xi32>
      %73 = arith.cmpi eq, %71, %72 : vector<8x128xi32>
      %c1_i32 = arith.constant 1 : i32
      %74 = vector.broadcast %c1_i32 : i32 to vector<8x128xi32>
      %75 = arith.cmpi eq, %71, %74 : vector<8x128xi32>
      %cst_36 = arith.constant 0.000000e+00 : f32
      %76 = vector.broadcast %70 : f32 to vector<8x128xf32>
      %77 = vector.broadcast %cst_36 : f32 to vector<8x128xf32>
      %78 = arith.select %75, %76, %77 : vector<8x128xi1>, vector<8x128xf32>
      %79 = vector.broadcast %64 : f32 to vector<8x128xf32>
      %80 = arith.select %73, %79, %78 : vector<8x128xi1>, vector<8x128xf32>
      %c0_37 = arith.constant 0 : index
      %c0_38 = arith.constant 0 : index
      %c0_39 = arith.constant 0 : index
      %81 = vector.load %arg4[%c0_37, %c0_38, %c0_39] : memref<1x8x128xf32, #tpu.memory_space<vmem>>, vector<1x8x128xf32>
      %82 = vector.shape_cast %81 : vector<1x8x128xf32> to vector<8x128xf32>
      %83 = vector.shape_cast %80 : vector<8x128xf32> to vector<1x8x128xf32>
      tpu.vector_store %arg4[%c0_37, %c0_38, %c0_39], %83 {strides = array<i32>} : memref<1x8x128xf32, #tpu.memory_space<vmem>>, vector<1x8x128xf32>,
    } else {
    }
    return
  }
  func.func @transform_0(%arg0: i32, %arg1: i32) -> (i32, i32) {
    %c0_i32 = arith.constant 0 : i32
    return %arg0, %arg1 : i32, i32
  }
  func.func @transform_1(%arg0: i32, %arg1: i32) -> (i32, i32) {
    %c0_i32 = arith.constant 0 : i32
    %c0_i32_0 = arith.constant 0 : i32
    return %arg0, %c0_i32 : i32, i32
  }
  func.func @transform_2(%arg0: i32, %arg1: i32) -> (i32, i32, i32) {
    %c0_i32 = arith.constant 0 : i32
    %c0_i32_0 = arith.constant 0 : i32
    %c0_i32_1 = arith.constant 0 : i32
    return %arg0, %c0_i32, %c0_i32_0 : i32, i32, i32
  }
}

</mosaic_0001>

<llo_original>
// kernel: tpu_custom_call.1
$region0: #{tpu_custom_call.1}
  #allocation0 [shape = 'u32[]', space=smem, size = 0x4, offset = 0x4, fixed_abs, tag = 'smem constant byte address 0x4 - core index']
  #allocation1 [shape = 'u32[144,128]{1,0:T(1,128)}', space=vmem, size = 0x12000, scoped, tag = 'internal scratch']
  #allocation2 [shape = 'f32[8,1]{1,0:T(8,128)}', space=vmem, size = 0x1000, scoped, tag = 'scratch operand']
  #allocation3 [shape = 'f32[8,1]{1,0:T(8,128)}', space=vmem, size = 0x1000, scoped, tag = 'scratch operand']
  #allocation4 [shape = 'f32[8,1]{1,0:T(8,128)}', space=vmem, size = 0x1000, scoped, tag = 'scratch operand']
  %s0 = inlined_call_operand.vmem [shape: f32[8,32], index: 0, kind: input, shape index: {}]
  %s1 = inlined_call_operand.vmem [shape: s32[8,1], index: 1, kind: input, shape index: {}]
  %s2 = inlined_call_operand.hbm [shape: f32[1,8,128], index: 2, kind: output, shape index: {}]
  %s3 = sld [smem:[#allocation0]]
  $region26: #{tpu_custom_call.1} parent=0
    _
  %s5 = ssub.s32 1, %s3
  %s6 = scalar_select 0, %s5, %s3
  $region1: #{tpu_custom_call.1} parent=0
    #allocation5 [shape = 'u8[4096]{0}', space=vmem, size = 0x1000, scoped, tag = 'output window, operand 0, single buffered']
    #allocation6 [shape = 's32[1]{0}', space=sflag, size = 0x4, scoped, tag = 'scoped memory for tpu_custom_call.1']
    %7 = vsyncpa [#allocation6], 0
    // Predicated region
    $region2: #{tpu_custom_call.1} parent=1 // pred_check
      _
    $region3: #{tpu_custom_call.1} parent=1 // pred_check_branch
      %9 = sbr.rel (0) target = $region5
    $region4: #{tpu_custom_call.1} parent=1 // pred_region
      _
    $region5: #{tpu_custom_call.1} parent=1 // pred_fallthru
      _
    // Predicated region
    $region6: #{tpu_custom_call.1} parent=1 // pred_check
      _
    $region7: #{tpu_custom_call.1} parent=1 // pred_check_branch
      %11 = sbr.rel (0) target = $region9
    $region8: #{tpu_custom_call.1} parent=1 // pred_region
      _
    $region9: #{tpu_custom_call.1} parent=1 // pred_fallthru
      _
    %p12 = scmp.eq.s32.totalorder 0, 0
    // Predicated region
    $region10: #{tpu_custom_call.1} parent=1 // pred_check
      %p13 = pneg %p12
    $region11: #{tpu_custom_call.1} parent=1 // pred_check_branch
      %15 = sbr.rel (%p13) target = $region13
    $region12: #{tpu_custom_call.1} parent=1 // pred_region
      %vm16 = vcmask 7168
      %17 = vst.msk [vmem:[#allocation2] sm:$0xff] %vm16, -inf
      %18 = vst.msk [vmem:[#allocation3] sm:$0xff] %vm16, 0.0
      %19 = vst.msk [vmem:[#allocation4] sm:$0xff] %vm16, 0.0
    $region13: #{tpu_custom_call.1} parent=1 // pred_fallthru
      _
    %v20 = vld [vmem:[%s0] sm:$0xff]
    %v21 = vld [vmem:[%s1] sm:$0xff]
    %s22 = smul.u32 0, 32
    %v23 = vlaneseq
    %v24 = vand.u32 %v23, 127
    %v25 = vstv %s22
    %v26 = vadd.s32 %v25, %v24
    %vm27 = vcmask 261120
    %v28 = vsel %vm27, %v20, -inf
    %29 = vmax.xlane.f32.xlu0 %v28
    %v30 = vpop.xlane.xlu0 %29
    %v31 = vld [vmem:[#allocation2] sm:$0xff]
    %v32 = vmax.f32 %v31, %v30
    %v33 = vsub.f32 %v31, %v32
    %v34 = vmul.f32 %v33, 1.442695
    %v35 = vpow.pop %v34
    %v36 = vld [vmem:[#allocation3] sm:$0xff]
    %v37 = vmul.f32 %v35, %v36
    %39 = vset.pattern.permute.xlu0 0
    %40 = vperm.xlu0 %39, %v32
    %v41 = vpop.permute.xlu0 %40
    %v43 = vsub.f32 %v20, %v41
    %v44 = vmul.f32 %v43, 1.442695
    %v45 = vpow.pop %v44
    %v46 = vsel %vm27, %v45, 0.0
    %47 = vadd.xlane.f32.xlu0 %v46
    %v48 = vpop.xlane.xlu0 %47
    %v49 = vadd.f32 %v37, %v48
    %vm50 = vcmask 7168
    %51 = vst.msk [vmem:[#allocation3] sm:$0xff] %vm50, %v49
    %52 = vst.msk [vmem:[#allocation2] sm:$0xff] %vm50, %v32
    %53 = vset.pattern.permute.xlu0 0
    %54 = vperm.xlu0 %53, %v21
    %v55 = vpop.permute.xlu0 %54
    %vm56 = vcmp.eq.s32.totalorder %v26, %v55
    %v57 = vld [vmem:[#allocation4] sm:$0xff]
    %v58 = vsel %vm56, %v20, 0.0
    %v59 = vsel %vm27, %v58, 0.0
    %60 = vadd.xlane.f32.xlu0 %v59
    %v61 = vpop.xlane.xlu0 %60
    %v62 = vadd.f32 %v57, %v61
    %63 = vst.msk [vmem:[#allocation4] sm:$0xff] %vm50, %v62
    // Predicated region
    $region14: #{tpu_custom_call.1} parent=1 // pred_check
      %p64 = pneg %p12
    $region15: #{tpu_custom_call.1} parent=1 // pred_check_branch
      %66 = sbr.rel (%p64) target = $region17
    $region16: #{tpu_custom_call.1} parent=1 // pred_region
      %s67 = smul.u32 0, 8
      %v68 = vlaneseq
      %v69 = vshrl.u32 %v68, 7
      %v70 = vstv %s67
      %v71 = vadd.s32 %v70, %v69
      %v72 = vld [vmem:[%s1] sm:$0xff]
      %vm73 = vcmp.lt.s32.totalorder %v71, 8
      %vm74 = vcmp.ge.s32.totalorder %v72, 0
      %vm75 = vcmp.lt.s32.totalorder %v72, 32
      %vm76 = vmand %vm74, %vm75
      %vm77 = vcmp.ne.s32.totalorder %v72, 4294967196
      %vm78 = vmand %vm76, %vm77
      %vm79 = vmand %vm73, %vm78
      %v80 = vld [vmem:[#allocation2] sm:$0xff]
      %v81 = vld [vmem:[#allocation3] sm:$0xff]
      %v82 = vlog2.pop %v81
      %v83 = vmul.f32 %v82, 0.6931472
      %v84 = vadd.f32 %v80, %v83
      %v85 = vld [vmem:[#allocation4] sm:$0xff]
      %v86 = vsub.f32 %v84, %v85
      %v87 = vsel %vm79, %v86, 0.0
      %v88 = vsel %vm50, %v87, 0.0
      %89 = vadd.xlane.f32.xlu0 %v88
      %v90 = vpop.xlane.xlu0 %89
      %v91 = vrot.slane %v90, 4
      %v92 = vadd.f32 %v90, %v91
      %v93 = vrot.slane %v92, 2
      %v94 = vadd.f32 %v92, %v93
      %v95 = vrot.slane %v94, 1
      %v96 = vadd.f32 %v94, %v95
      %s97 = vtos %v96
      %v98 = vsel %vm79, 1, 0
      %v99 = vcvt.s32.f32 %v98
      %v100 = vsel %vm50, %v99, 0.0
      %101 = vadd.xlane.f32.xlu0 %v100
      %v102 = vpop.xlane.xlu0 %101
      %v103 = vrot.slane %v102, 4
      %v104 = vadd.f32 %v102, %v103
      %v105 = vrot.slane %v104, 2
      %v106 = vadd.f32 %v104, %v105
      %v107 = vrot.slane %v106, 1
      %v108 = vadd.f32 %v106, %v107
      %s109 = vtos %v108
      %vm110 = vcmp.eq.s32.totalorder %v69, 0
      %vm111 = vcmp.eq.s32.totalorder %v69, 1
      %v112 = vstv %s109
      %v113 = vsel %vm111, %v112, 0.0
      %v114 = vstv %s97
      %v115 = vsel %vm110, %v114, %v113
      %116 = vst [vmem:[#allocation5] sm:$0xff] %v115
    $region17: #{tpu_custom_call.1} parent=1 // pred_fallthru
      _
    // Predicated region
    $region18: #{tpu_custom_call.1} parent=1 // pred_check
      _
    $region19: #{tpu_custom_call.1} parent=1 // pred_check_branch
      %118 = sbr.rel (0) target = $region21
    $region20: #{tpu_custom_call.1} parent=1 // pred_region
      %s120 = ssub.s32 128, 128
      %121 = vsyncadd [#allocation6], %s120
      %s123 = sshll.u32 [#allocation5], 4
      %s124 = int_to_ptr.vmem [resolvable:$true] %s123
      %126 = dma.vmem_to_hbm [thread:$0]  %s124, 128, %s2, [#allocation6]
    $region21: #{tpu_custom_call.1} parent=1 // pred_fallthru
      _
    // Predicated region
    $region22: #{tpu_custom_call.1} parent=1 // pred_check
      _
    $region23: #{tpu_custom_call.1} parent=1 // pred_check_branch
      %128 = sbr.rel (0) target = $region25
    $region24: #{tpu_custom_call.1} parent=1 // pred_region
      %129 = dma.done [#allocation6], 128
    $region25: #{tpu_custom_call.1} parent=1 // pred_fallthru
      _
    %130 = vsyncpa [#allocation6], 1

</llo_original>
